<compile_context>
chip_gen: v5e
topology: v5e:2x2
jax: 0.10.0
libtpu: 0.0.40
codegen_flags: <defaults>
</compile_context>

<pallas_src>
import math

import jax
import jax.numpy as jnp
from jax.experimental import pallas as pl
from jax.experimental.pallas import tpu as pltpu


def _gain_kernel(x_ref, s_ref, o_ref):
    # x_ref: (TM, TL) tile; s_ref: (TM, 1) per-row scale OR (1, TL) per-lane scale.
    # Broadcasting covers both layouts; astype handles any residual dtype mismatch.
    o_ref[...] = (x_ref[...] * s_ref[...]).astype(o_ref.dtype)


def _vmem_capacity_bytes() -> int:
    """Physical VMEM per TensorCore; conservative fallback if the query is unavailable."""
    try:
        info = pltpu.get_tpu_info()
        for attr in ("vmem_capacity_bytes", "vmem_size_bytes", "vmem_bytes"):
            v = getattr(info, attr, None)
            if v:
                return int(v)
    except Exception:
        pass
    return 64 * 1024 * 1024  # v7x per-TC VMEM (smallest across v5e/v6e/v7x)


def _round_up(a: int, b: int) -> int:
    return -(-a // b) * b


def gain_forward(x: jax.Array, gain: jax.Array) -> jax.Array:
    """x: (N, C, *spatial); gain: (C,). Returns x * gain broadcast on axis 1."""
    orig_shape = x.shape
    assert x.ndim >= 2, "Gain expects channel axis 1"
    N, C = orig_shape[0], orig_shape[1]
    assert gain.shape == (C,)

    L = int(math.prod(orig_shape[2:])) if x.ndim > 2 else 1
    itemsize = jnp.dtype(x.dtype).itemsize
    pack = max(8, 32 // itemsize)  # sublane packing: f32 -> 8, bf16 -> 16, int8/fp8 -> 32

    # Keep the multiply packed in x's dtype (bf16 VALU on v6e/v7x; harmless elsewhere).
    scale_dtype = x.dtype if jnp.issubdtype(jnp.dtype(x.dtype), jnp.floating) else gain.dtype

    # Generation-aware VMEM budget: ~48 MiB scoped on v7x (64 MiB phys), ~96 MiB on v5e/v6e.
    vmem_cap = _vmem_capacity_bytes()
    vmem_limit = min((vmem_cap * 3) // 4, 96 * 1024 * 1024)
    # Per-x-tile target; pipelined footprint ~ 4x tile (double-buffered in + out).
    target_bytes = min(8 * 1024 * 1024, vmem_limit // 8)

    if L < 128:
        # Tiny spatial extent: fold channels (and spatial) into the lane axis so every
        # store stays lane-dense; a single (1, C*L) scale row broadcasts across sublanes.
        rows, cols = N, C * L
        scale = jnp.broadcast_to(gain.astype(scale_dtype)[:, None], (C, L)).reshape(1, cols)
        scale_is_row = True
    else:
        # Lane-dense (N*C, L) view with a per-row scale column.
        rows, cols = N * C, L
        scale = jnp.broadcast_to(gain.astype(scale_dtype)[None, :], (N, C)).reshape(rows, 1)
        scale_is_row = False

    x2 = x.reshape(rows, cols)

    # --- Tile selection -------------------------------------------------------------
    row_bytes = cols * itemsize
    if pack * row_bytes > target_bytes and cols > 128:
        # Huge L: block the lane axis too (TL multiple of 128 keeps stores unmasked
        # except in the ragged last column block) so tiles never exceed the budget.
        tm = rows if rows <= pack else pack
        tl = max(128, (target_bytes // (pack * itemsize)) // 128 * 128)
        tl = min(tl, _round_up(cols, 128))
    else:
        tl = cols
        if rows <= pack:
            tm = rows  # full dim — always a legal block
        else:
            tm = max(pack, (target_bytes // max(1, row_bytes)) // pack * pack)
            tm = min(tm, _round_up(rows, pack))
            # Ensure >=2 row blocks so both v7x TensorCores get work (harmless on 1-TC chips).
            if -(-rows // tm) < 2 and rows >= 2 * pack:
                tm = _round_up(-(-rows // 2), pack)

    grid = (pl.cdiv(rows, tm), pl.cdiv(cols, tl))  # ragged tail blocks are masked, no padding copies

    if scale_is_row:
        s_spec = pl.BlockSpec((1, tl), lambda i, j: (0, j))
    else:
        s_spec = pl.BlockSpec((tm, 1), lambda i, j: (i, 0))

    out2 = pl.pallas_call(
        _gain_kernel,
        out_shape=jax.ShapeDtypeStruct((rows, cols), x.dtype),
        grid_spec=pltpu.PrefetchScalarGridSpec(
            num_scalar_prefetch=0,
            grid=grid,
            in_specs=[
                pl.BlockSpec((tm, tl), lambda i, j: (i, j)),  # x tile (lane-dense)
                s_spec,                                        # broadcasted gain
            ],
            out_specs=pl.BlockSpec((tm, tl), lambda i, j: (i, j)),
        ),
        compiler_params=pltpu.CompilerParams(
            dimension_semantics=("parallel", "parallel"),
            vmem_limit_bytes=vmem_limit,
        ),
        cost_estimate=pl.CostEstimate(
            flops=rows * cols,
            transcendentals=0,
            bytes_accessed=2 * rows * cols * itemsize
            + scale.size * jnp.dtype(scale_dtype).itemsize,
        ),
    )(x2, scale)

    return out2.reshape(orig_shape)


if __name__ == "__main__":
    key = jax.random.PRNGKey(0)
    N, C, H, W = 2, 4, 16, 16
    x = jax.random.normal(key, (N, C, H, W), dtype=jnp.float32)

    # Gain.__init__ -> Parameter(torch.empty(num_features)); reset_parameters -> ones_
    gain = jnp.ones((C,), dtype=jnp.float32)
    out = jax.block_until_ready(gain_forward(x, gain))
    ref = x * gain.reshape(1, C, 1, 1)
    assert out.shape == ref.shape
    assert jnp.allclose(out, ref, atol=1e-6), "mismatch vs reference"

    # Non-trivial gain to verify per-channel broadcasting semantics.
    gain2 = jnp.arange(1.0, C + 1.0, dtype=jnp.float32)
    out2 = jax.block_until_ready(gain_forward(x, gain2))
    ref2 = x * gain2.reshape(1, C, 1, 1)
    assert jnp.allclose(out2, ref2, atol=1e-6), "mismatch vs reference (gain2)"

    # Mixed dtype: bf16 activations with f32 gain (kernel keeps the multiply in bf16).
    xb = x.astype(jnp.bfloat16)
    out3 = jax.block_until_ready(gain_forward(xb, gain2))
    ref3 = (xb.astype(jnp.float32) * gain2.reshape(1, C, 1, 1)).astype(jnp.bfloat16)
    assert out3.dtype == jnp.bfloat16
    assert jnp.allclose(out3.astype(jnp.float32), ref3.astype(jnp.float32),
                        rtol=2e-2, atol=2e-2), "mismatch vs reference (bf16)"

    k1, k2, k3 = jax.random.split(key, 3)

    # Ragged shapes (grid masking path — no jnp.pad / output slice copies).
    xr = jax.random.normal(k1, (2, 3, 5, 40), dtype=jnp.float32)   # L = 200
    gr = jax.random.normal(k2, (3,), dtype=jnp.float32)
    outr = jax.block_until_ready(gain_forward(xr, gr))
    assert jnp.allclose(outr, xr * gr.reshape(1, 3, 1, 1), atol=1e-6), "mismatch (ragged)"

    # Tiny spatial extent -> channels folded into the lane axis.
    xs = jax.random.normal(k3, (4, 6, 3, 3), dtype=jnp.float32)    # L = 9 < 128
    gs = jnp.arange(1.0, 7.0, dtype=jnp.float32)
    outs = jax.block_until_ready(gain_forward(xs, gs))
    assert jnp.allclose(outs, xs * gs.reshape(1, 6, 1, 1), atol=1e-6), "mismatch (small-L)"

    # Multi-row-block path (>= 2 grid steps along rows).
    xm = jax.random.normal(key, (2, 64, 16, 16), dtype=jnp.float32)
    gm = jax.random.normal(k2, (64,), dtype=jnp.float32)
    outm = jax.block_until_ready(gain_forward(xm, gm))
    assert jnp.allclose(outm, xm * gm.reshape(1, 64, 1, 1), atol=1e-6), "mismatch (multi-block)"

    print("KERNEL_OK")
</pallas_src>

<mosaic_0001>
module attributes {stable_mosaic.version = 11 : i64} {
  func.func @_gain_kernel(%arg0: i32, %arg1: i32, %arg2: memref<8x256xf32, #tpu.memory_space<vmem>>, %arg3: memref<8x1xf32, #tpu.memory_space<vmem>>, %arg4: memref<8x256xf32, #tpu.memory_space<vmem>>) attributes {dimension_semantics = [#tpu.dimension_semantics<parallel>, #tpu.dimension_semantics<parallel>], iteration_bounds = array<i64: 1, 1>, scalar_prefetch = 0 : i64, scratch_operands = 0 : i64, tpu.core_type = #tpu.core_type<tc>, window_params = [{transform_indices = @transform_0, window_bounds = array<i64: 8, 256>}, {transform_indices = @transform_1, window_bounds = array<i64: 8, 1>}, {transform_indices = @transform_2, window_bounds = array<i64: 8, 256>}]} {
    %c0 = arith.constant 0 : index
    %c0_0 = arith.constant 0 : index
    %0 = vector.load %arg2[%c0, %c0_0] : memref<8x256xf32, #tpu.memory_space<vmem>>, vector<8x256xf32>
    %c0_1 = arith.constant 0 : index
    %c0_2 = arith.constant 0 : index
    %1 = vector.load %arg3[%c0_1, %c0_2] : memref<8x1xf32, #tpu.memory_space<vmem>>, vector<8x1xf32>
    %2 = vector.broadcast %1 : vector<8x1xf32> to vector<8x256xf32>
    %3 = arith.mulf %0, %2 : vector<8x256xf32>
    %c0_3 = arith.constant 0 : index
    %c0_4 = arith.constant 0 : index
    %4 = vector.load %arg4[%c0_3, %c0_4] : memref<8x256xf32, #tpu.memory_space<vmem>>, vector<8x256xf32>
    tpu.vector_store %arg4[%c0_3, %c0_4], %3 {strides = array<i32>} : memref<8x256xf32, #tpu.memory_space<vmem>>, vector<8x256xf32>,
    return
  }
  func.func @transform_0(%arg0: i32, %arg1: i32) -> (i32, i32) {
    %c0_i32 = arith.constant 0 : i32
    return %arg0, %arg1 : i32, i32
  }
  func.func @transform_1(%arg0: i32, %arg1: i32) -> (i32, i32) {
    %c0_i32 = arith.constant 0 : i32
    %c0_i32_0 = arith.constant 0 : i32
    return %arg0, %c0_i32 : i32, i32
  }
  func.func @transform_2(%arg0: i32, %arg1: i32) -> (i32, i32) {
    %c0_i32 = arith.constant 0 : i32
    return %arg0, %arg1 : i32, i32
  }
}

</mosaic_0001>

<llo_original>
// kernel: tpu_custom_call.1
$region0: #{tpu_custom_call.1}
  #allocation0 [shape = 'u32[]', space=smem, size = 0x4, offset = 0x4, fixed_abs, tag = 'smem constant byte address 0x4 - core index']
  #allocation1 [shape = 'u32[72,128]{1,0:T(1,128)}', space=vmem, size = 0x9000, scoped, tag = 'internal scratch']
  %s0 = inlined_call_operand.hbm [shape: f32[8,256], index: 0, kind: input, shape index: {}]
  %s1 = inlined_call_operand.vmem [shape: f32[8,1], index: 1, kind: input, shape index: {}]
  %s2 = inlined_call_operand.hbm [shape: f32[8,256], index: 2, kind: output, shape index: {}]
  %s3 = sld [smem:[#allocation0]]
  $region22: #{tpu_custom_call.1} parent=0
    _
  %s5 = ssub.s32 1, %s3
  %s6 = scalar_select 0, %s5, %s3
  $region1: #{tpu_custom_call.1} parent=0
    #allocation2 [shape = 'u8[8192]{0}', space=vmem, size = 0x2000, scoped, tag = 'input window, operand 0, single buffered']
    #allocation3 [shape = 's32[1]{0}', space=sflag, size = 0x4, scoped, tag = 'scoped memory for tpu_custom_call.1']
    #allocation4 [shape = 's32[1]{0}', space=sflag, size = 0x4, scoped, tag = 'scoped memory for tpu_custom_call.1']
    #allocation5 [shape = 'u8[8192]{0}', space=vmem, size = 0x2000, scoped, tag = 'output window, operand 0, single buffered']
    %7 = vsyncpa [#allocation3], 0
    %8 = vsyncpa [#allocation4], 0
    // Predicated region
    $region2: #{tpu_custom_call.1} parent=1 // pred_check
      _
    $region3: #{tpu_custom_call.1} parent=1 // pred_check_branch
      %10 = sbr.rel (0) target = $region5
    $region4: #{tpu_custom_call.1} parent=1 // pred_region
      %12 = vsyncadd [#allocation3], 0
      %s14 = sshll.u32 %s0, 4
      %s15 = int_to_ptr.hbm [resolvable:$true] %s14
      %s16 = sshll.u32 [#allocation2], 4
      %s17 = int_to_ptr.vmem [resolvable:$true] %s16
      %19 = dma.hbm_to_vmem [thread:$0]  %s15, 256, %s17, [#allocation3]
    $region5: #{tpu_custom_call.1} parent=1 // pred_fallthru
      _
    // Predicated region
    $region6: #{tpu_custom_call.1} parent=1 // pred_check
      _
    $region7: #{tpu_custom_call.1} parent=1 // pred_check_branch
      %21 = sbr.rel (0) target = $region9
    $region8: #{tpu_custom_call.1} parent=1 // pred_region
      _
    $region9: #{tpu_custom_call.1} parent=1 // pred_fallthru
      _
    // Predicated region
    $region10: #{tpu_custom_call.1} parent=1 // pred_check
      _
    $region11: #{tpu_custom_call.1} parent=1 // pred_check_branch
      %23 = sbr.rel (0) target = $region13
    $region12: #{tpu_custom_call.1} parent=1 // pred_region
      %25 = dma.done [#allocation3], 256
    $region13: #{tpu_custom_call.1} parent=1 // pred_fallthru
      _
    %v26 = vld [vmem:[#allocation2] sm:$0xff]
    %v27 = vld [vmem:[#allocation2 + $0x8] sm:$0xff]
    %v28 = vld [vmem:[%s1] sm:$0xff]
    %30 = vset.pattern.permute.xlu0 0
    %31 = vperm.xlu0 %30, %v28
    %v32 = vpop.permute.xlu0 %31
    %v34 = vmul.f32 %v26, %v32
    %v35 = vmul.f32 %v27, %v32
    %36 = vst [vmem:[#allocation5] sm:$0xff] %v34
    %37 = vst [vmem:[#allocation5 + $0x8] sm:$0xff] %v35
    // Predicated region
    $region14: #{tpu_custom_call.1} parent=1 // pred_check
      _
    $region15: #{tpu_custom_call.1} parent=1 // pred_check_branch
      %39 = sbr.rel (0) target = $region17
    $region16: #{tpu_custom_call.1} parent=1 // pred_region
      %41 = vsyncadd [#allocation4], 0
      %s43 = sshll.u32 [#allocation5], 4
      %s44 = int_to_ptr.vmem [resolvable:$true] %s43
      %s45 = sshll.u32 %s2, 4
      %s46 = int_to_ptr.hbm [resolvable:$true] %s45
      %48 = dma.vmem_to_hbm [thread:$0]  %s44, 256, %s46, [#allocation4]
    $region17: #{tpu_custom_call.1} parent=1 // pred_fallthru
      _
    // Predicated region
    $region18: #{tpu_custom_call.1} parent=1 // pred_check
      _
    $region19: #{tpu_custom_call.1} parent=1 // pred_check_branch
      %50 = sbr.rel (0) target = $region21
    $region20: #{tpu_custom_call.1} parent=1 // pred_region
      %52 = dma.done [#allocation4], 256
    $region21: #{tpu_custom_call.1} parent=1 // pred_fallthru
      _
    %53 = vsyncpa [#allocation3], 1
    %54 = vsyncpa [#allocation4], 1

</llo_original>
